<compile_context>
chip_gen: v7x
topology: tpu7x:2x2x1
jax: 0.10.0
libtpu: 0.0.40
codegen_flags: <defaults>
</compile_context>

<pallas_src>
import jax
import jax.numpy as jnp
from jax.experimental import pallas as pl
from jax.experimental.pallas import tpu as pltpu

HIDDEN = 32        # config.encoder_hidden_size
N_WORDS = 10       # config.input_lang_n_words
N_LAYERS = 3       # config.encoder_n_layers
GATE_PAD = 128     # fused gate width 3*H = 96, lane-padded to 128


def _gru_encoder_kernel(toks_ref,    # scalar-prefetch token ids (SMEM); used by index_maps
                        x_ref,       # (1, 1, H)  embedded token for this grid step
                        h0_ref,      # (1, H)     initial hidden (resident)
                        wi_ref,      # (H, 128)   fused W_ih^T  [r|z|n| 0-pad]  (resident)
                        wh_ref,      # (H, 128)   fused W_hh^T  [r|z|n| 0-pad]  (resident)
                        bi_ref,      # (1, 128)   [b_ir+b_hr | b_iz+b_hz | b_in | 0]
                        bhn_ref,     # (1, 128)   [0 | 0 | b_hn | 0]
                        out_ref,     # (1, 1, H)  per-step output (== new hidden)
                        h_scratch):  # (1, H)     VMEM carry across grid steps
    del toks_ref  # token selection happens in the BlockSpec index_map
    H = HIDDEN
    t = pl.program_id(0)

    @pl.when(t == 0)
    def _():
        h_scratch[...] = h0_ref[...]

    wi = wi_ref[...]
    wh = wh_ref[...]
    bi = bi_ref[...]
    bhn = bhn_ref[...]

    x = x_ref[0]            # (1, H) embedded token
    h = h_scratch[...]      # (1, H) carried hidden state

    # PyTorch-tutorial EncoderRNN: the SAME single-layer GRU is applied
    # n_layers times; the output of iteration i is the input of i+1.
    for _ in range(N_LAYERS):   # static unroll (trip count is a compile-time 3)
        gi = jnp.dot(x, wi, preferred_element_type=jnp.float32) + bi   # (1, 128)
        gh = jnp.dot(h, wh, preferred_element_type=jnp.float32) + bhn  # (1, 128)
        r = jax.nn.sigmoid(gi[:, 0:H] + gh[:, 0:H])
        z = jax.nn.sigmoid(gi[:, H:2 * H] + gh[:, H:2 * H])
        n = jnp.tanh(gi[:, 2 * H:3 * H] + r * gh[:, 2 * H:3 * H])
        h = (1.0 - z) * n + z * h
        x = h

    h_scratch[...] = h
    out_ref[0] = h          # single lane-masked store; no duplicate hidden store


def init_params(key, n_words=N_WORDS, hidden=HIDDEN):
    """Deterministic synthetic params matching nn.Embedding + nn.GRU layouts."""
    ks = jax.random.split(key, 5)
    k = 1.0 / jnp.sqrt(hidden)
    return {
        "embedding": jax.random.normal(ks[0], (n_words, hidden), jnp.float32),
        # PyTorch layouts: weight_ih_l0 (3H, H), weight_hh_l0 (3H, H),
        # bias_ih_l0 (3H,), bias_hh_l0 (3H,); gate order r, z, n.
        "weight_ih": jax.random.uniform(ks[1], (3 * hidden, hidden), jnp.float32, -k, k),
        "weight_hh": jax.random.uniform(ks[2], (3 * hidden, hidden), jnp.float32, -k, k),
        "bias_ih": jax.random.uniform(ks[3], (3 * hidden,), jnp.float32, -k, k),
        "bias_hh": jax.random.uniform(ks[4], (3 * hidden,), jnp.float32, -k, k),
    }


def prepare_params(params):
    """One-time preprocessing (hoisted out of the per-call path):
    fuse + transpose + lane-pad GRU weights, pre-sum r/z biases, reshape the
    embedding table to (N_WORDS, 1, H) for the data-dependent BlockSpec."""
    H = HIDDEN
    wih = params["weight_ih"].astype(jnp.float32)   # (3H, H), rows (r|z|n)
    whh = params["weight_hh"].astype(jnp.float32)
    bih = params["bias_ih"].astype(jnp.float32)
    bhh = params["bias_hh"].astype(jnp.float32)

    wi = jnp.zeros((H, GATE_PAD), jnp.float32).at[:, :3 * H].set(wih.T)
    wh = jnp.zeros((H, GATE_PAD), jnp.float32).at[:, :3 * H].set(whh.T)

    bi = jnp.zeros((1, GATE_PAD), jnp.float32)
    bi = bi.at[0, 0:H].set(bih[0:H] + bhh[0:H])                 # r: b_ir + b_hr
    bi = bi.at[0, H:2 * H].set(bih[H:2 * H] + bhh[H:2 * H])     # z: b_iz + b_hz
    bi = bi.at[0, 2 * H:3 * H].set(bih[2 * H:3 * H])            # n: b_in
    bhn = jnp.zeros((1, GATE_PAD), jnp.float32)
    bhn = bhn.at[0, 2 * H:3 * H].set(bhh[2 * H:3 * H])          # n: b_hn (inside r*)

    emb3 = params["embedding"].astype(jnp.float32).reshape(N_WORDS, 1, H)
    return {"emb3": emb3, "wi": wi, "wh": wh, "bi": bi, "bhn": bhn}


def _build_seq_call(seq_len):
    H = HIDDEN
    grid_spec = pltpu.PrefetchScalarGridSpec(
        num_scalar_prefetch=1,           # token ids land in SMEM, drive index_maps
        grid=(seq_len,),
        in_specs=[
            # embedded token row selected by token id (data-dependent index_map)
            pl.BlockSpec((1, 1, H), lambda t, toks: (toks[t], 0, 0)),
            # h0 + weights/biases: constant block index -> DMA'd once, VMEM-resident
            pl.BlockSpec((1, H), lambda t, toks: (0, 0)),
            pl.BlockSpec((H, GATE_PAD), lambda t, toks: (0, 0)),
            pl.BlockSpec((H, GATE_PAD), lambda t, toks: (0, 0)),
            pl.BlockSpec((1, GATE_PAD), lambda t, toks: (0, 0)),
            pl.BlockSpec((1, GATE_PAD), lambda t, toks: (0, 0)),
        ],
        out_specs=pl.BlockSpec((1, 1, H), lambda t, toks: (t, 0, 0)),
        scratch_shapes=[pltpu.VMEM((1, H), jnp.float32)],
    )
    return pl.pallas_call(
        _gru_encoder_kernel,
        out_shape=jax.ShapeDtypeStruct((seq_len, 1, H), jnp.float32),
        grid_spec=grid_spec,
        compiler_params=pltpu.CompilerParams(
            dimension_semantics=("arbitrary",)),   # recurrent over tokens
    )


def encoder_rnn_forward_sequence(tokens, hidden, prepared):
    """Fused encoder: run the whole token sequence in ONE pallas_call.
    tokens: (S,) int32; hidden: (1, 1, H) f32.
    Returns (outputs (S, 1, 1, H), final_hidden (1, 1, H))."""
    seq_len = int(tokens.shape[0])
    H = HIDDEN
    h0 = hidden.reshape(1, H).astype(jnp.float32)
    out = _build_seq_call(seq_len)(
        tokens.astype(jnp.int32), prepared["emb3"], h0,
        prepared["wi"], prepared["wh"], prepared["bi"], prepared["bhn"])
    outputs = out.reshape(seq_len, 1, 1, H)
    final_hidden = out[seq_len - 1].reshape(1, 1, H)
    return outputs, final_hidden


def encoder_rnn_forward(token, hidden, prepared):
    """Single-token forward matching the PyTorch module signature:
    returns (output, hidden), both (1, 1, H)."""
    tokens = jnp.reshape(token, (1,)).astype(jnp.int32)
    outputs, final_hidden = encoder_rnn_forward_sequence(tokens, hidden, prepared)
    return outputs[0], final_hidden


def encoder_rnn_reference_sequence(tokens, hidden, params):
    """Pure-JAX per-token reference (PyTorch semantics, unfused weights)."""
    H = HIDDEN
    h = hidden.reshape(1, H)
    Wih, Whh = params["weight_ih"], params["weight_hh"]
    bih, bhh = params["bias_ih"], params["bias_hh"]
    outs = []
    for t in range(int(tokens.shape[0])):
        x = params["embedding"][tokens[t]].reshape(1, H)
        for _ in range(N_LAYERS):
            gi = x @ Wih.T + bih
            gh = h @ Whh.T + bhh
            r = jax.nn.sigmoid(gi[:, :H] + gh[:, :H])
            z = jax.nn.sigmoid(gi[:, H:2 * H] + gh[:, H:2 * H])
            n = jnp.tanh(gi[:, 2 * H:] + r * gh[:, 2 * H:])
            h = (1.0 - z) * n + z * h
            x = h
        outs.append(h.reshape(1, 1, H))
    return jnp.stack(outs, axis=0), h.reshape(1, 1, H)


if __name__ == "__main__":
    key = jax.random.PRNGKey(0)
    pkey, tkey = jax.random.split(key)
    params = init_params(pkey)
    prepared = prepare_params(params)      # one-time weight prep (hoisted)

    SEQ_LEN = 8
    tokens = jax.random.randint(tkey, (SEQ_LEN,), 0, N_WORDS, dtype=jnp.int32)
    hidden0 = jnp.zeros((1, 1, HIDDEN), jnp.float32)   # initHidden()

    # fused whole-sequence path
    outs, hid = encoder_rnn_forward_sequence(tokens, hidden0, prepared)
    outs = jax.block_until_ready(outs)
    hid = jax.block_until_ready(hid)

    ref_outs, ref_hid = encoder_rnn_reference_sequence(tokens, hidden0, params)
    assert outs.shape == (SEQ_LEN, 1, 1, HIDDEN)
    assert hid.shape == (1, 1, HIDDEN)
    assert jnp.allclose(outs, ref_outs, atol=1e-4, rtol=1e-4)
    assert jnp.allclose(hid, ref_hid, atol=1e-4, rtol=1e-4)

    # single-token path (original module's forward signature)
    out1, hid1 = encoder_rnn_forward(tokens[0], hidden0, prepared)
    out1 = jax.block_until_ready(out1)
    ref_out1, ref_hid1 = encoder_rnn_reference_sequence(tokens[:1], hidden0, params)
    assert out1.shape == (1, 1, HIDDEN) and hid1.shape == (1, 1, HIDDEN)
    assert jnp.allclose(out1, ref_out1[0], atol=1e-4, rtol=1e-4)
    assert jnp.allclose(hid1, ref_hid1, atol=1e-4, rtol=1e-4)

    print("KERNEL_OK")
</pallas_src>

<mosaic_0001>
module attributes {stable_mosaic.version = 11 : i64} {
  func.func @_gru_encoder_kernel(%arg0: i32, %arg1: memref<8xi32, #tpu.memory_space<smem>>, %arg2: memref<1x1x32xf32, #tpu.memory_space<vmem>>, %arg3: memref<1x32xf32, #tpu.memory_space<vmem>>, %arg4: memref<32x128xf32, #tpu.memory_space<vmem>>, %arg5: memref<32x128xf32, #tpu.memory_space<vmem>>, %arg6: memref<1x128xf32, #tpu.memory_space<vmem>>, %arg7: memref<1x128xf32, #tpu.memory_space<vmem>>, %arg8: memref<1x1x32xf32, #tpu.memory_space<vmem>>, %arg9: memref<1x32xf32, #tpu.memory_space<vmem>>) attributes {dimension_semantics = [#tpu.dimension_semantics<arbitrary>], iteration_bounds = array<i64: 8>, scalar_prefetch = 1 : i64, scratch_operands = 1 : i64, tpu.core_type = #tpu.core_type<tc>, window_params = [{transform_indices = @transform_0, window_bounds = array<i64: 1, 1, 32>}, {pipeline_mode = #tpu.pipeline_mode<synchronous>, transform_indices = @transform_1, window_bounds = array<i64: 1, 32>}, {pipeline_mode = #tpu.pipeline_mode<synchronous>, transform_indices = @transform_2, window_bounds = array<i64: 32, 128>}, {pipeline_mode = #tpu.pipeline_mode<synchronous>, transform_indices = @transform_3, window_bounds = array<i64: 32, 128>}, {pipeline_mode = #tpu.pipeline_mode<synchronous>, transform_indices = @transform_4, window_bounds = array<i64: 1, 128>}, {pipeline_mode = #tpu.pipeline_mode<synchronous>, transform_indices = @transform_5, window_bounds = array<i64: 1, 128>}, {transform_indices = @transform_6, window_bounds = array<i64: 1, 1, 32>}]} {
    %c0_i32 = arith.constant 0 : i32
    %0 = arith.cmpi eq, %arg0, %c0_i32 : i32
    %1 = arith.extui %0 : i1 to i32
    %c0_i32_0 = arith.constant 0 : i32
    %2 = arith.cmpi ne, %1, %c0_i32_0 : i32
    scf.if %2 {
      %c0_32 = arith.constant 0 : index
      %c0_33 = arith.constant 0 : index
      %104 = vector.load %arg3[%c0_32, %c0_33] : memref<1x32xf32, #tpu.memory_space<vmem>>, vector<1x32xf32>
      %c0_34 = arith.constant 0 : index
      %c0_35 = arith.constant 0 : index
      %105 = vector.load %arg9[%c0_34, %c0_35] : memref<1x32xf32, #tpu.memory_space<vmem>>, vector<1x32xf32>
      tpu.vector_store %arg9[%c0_34, %c0_35], %104 {strides = array<i32>} : memref<1x32xf32, #tpu.memory_space<vmem>>, vector<1x32xf32>,
    } else {
    }
    %c0 = arith.constant 0 : index
    %c0_1 = arith.constant 0 : index
    %3 = vector.load %arg4[%c0, %c0_1] : memref<32x128xf32, #tpu.memory_space<vmem>>, vector<32x128xf32>
    %c0_2 = arith.constant 0 : index
    %c0_3 = arith.constant 0 : index
    %4 = vector.load %arg5[%c0_2, %c0_3] : memref<32x128xf32, #tpu.memory_space<vmem>>, vector<32x128xf32>
    %c0_4 = arith.constant 0 : index
    %c0_5 = arith.constant 0 : index
    %5 = vector.load %arg6[%c0_4, %c0_5] : memref<1x128xf32, #tpu.memory_space<vmem>>, vector<1x128xf32>
    %c0_6 = arith.constant 0 : index
    %c0_7 = arith.constant 0 : index
    %6 = vector.load %arg7[%c0_6, %c0_7] : memref<1x128xf32, #tpu.memory_space<vmem>>, vector<1x128xf32>
    %c0_8 = arith.constant 0 : index
    %c0_9 = arith.constant 0 : index
    %c0_10 = arith.constant 0 : index
    %7 = vector.load %arg2[%c0_8, %c0_9, %c0_10] : memref<1x1x32xf32, #tpu.memory_space<vmem>>, vector<1x1x32xf32>
    %8 = vector.shape_cast %7 : vector<1x1x32xf32> to vector<1x32xf32>
    %c0_11 = arith.constant 0 : index
    %c0_12 = arith.constant 0 : index
    %9 = vector.load %arg9[%c0_11, %c0_12] : memref<1x32xf32, #tpu.memory_space<vmem>>, vector<1x32xf32>
    %cst = arith.constant dense<0.000000e+00> : vector<1x128xf32>
    %10 = tpu.matmul %8, %3, %cst {dimension_numbers = #tpu.dot_dimension_numbers<[1], [0], [0], [1], [0, 0, 1, 1], [], []>} : vector<1x32xf32>, vector<32x128xf32>, vector<1x128xf32> -> vector<1x128xf32>
    %11 = arith.addf %10, %5 : vector<1x128xf32>
    %cst_13 = arith.constant dense<0.000000e+00> : vector<1x128xf32>
    %12 = tpu.matmul %9, %4, %cst_13 {dimension_numbers = #tpu.dot_dimension_numbers<[1], [0], [0], [1], [0, 0, 1, 1], [], []>} : vector<1x32xf32>, vector<32x128xf32>, vector<1x128xf32> -> vector<1x128xf32>
    %13 = arith.addf %12, %6 : vector<1x128xf32>
    %14 = vector.extract_strided_slice %11 {offsets = [0, 0], sizes = [1, 32], strides = [1, 1]} : vector<1x128xf32> to vector<1x32xf32>
    %15 = vector.extract_strided_slice %13 {offsets = [0, 0], sizes = [1, 32], strides = [1, 1]} : vector<1x128xf32> to vector<1x32xf32>
    %16 = arith.addf %14, %15 : vector<1x32xf32>
    %17 = arith.negf %16 : vector<1x32xf32>
    %18 = math.exp %17 : vector<1x32xf32>
    %cst_14 = arith.constant 1.000000e+00 : f32
    %19 = vector.broadcast %cst_14 : f32 to vector<1x32xf32>
    %20 = arith.addf %19, %18 : vector<1x32xf32>
    %21 = arith.divf %19, %20 : vector<1x32xf32>
    %22 = vector.extract_strided_slice %11 {offsets = [0, 32], sizes = [1, 32], strides = [1, 1]} : vector<1x128xf32> to vector<1x32xf32>
    %23 = vector.extract_strided_slice %13 {offsets = [0, 32], sizes = [1, 32], strides = [1, 1]} : vector<1x128xf32> to vector<1x32xf32>
    %24 = arith.addf %22, %23 : vector<1x32xf32>
    %25 = arith.negf %24 : vector<1x32xf32>
    %26 = math.exp %25 : vector<1x32xf32>
    %cst_15 = arith.constant 1.000000e+00 : f32
    %27 = vector.broadcast %cst_15 : f32 to vector<1x32xf32>
    %28 = arith.addf %27, %26 : vector<1x32xf32>
    %29 = arith.divf %27, %28 : vector<1x32xf32>
    %30 = vector.extract_strided_slice %11 {offsets = [0, 64], sizes = [1, 32], strides = [1, 1]} : vector<1x128xf32> to vector<1x32xf32>
    %31 = vector.extract_strided_slice %13 {offsets = [0, 64], sizes = [1, 32], strides = [1, 1]} : vector<1x128xf32> to vector<1x32xf32>
    %32 = arith.mulf %21, %31 : vector<1x32xf32>
    %33 = arith.addf %30, %32 : vector<1x32xf32>
    %34 = math.tanh %33 : vector<1x32xf32>
    %cst_16 = arith.constant 1.000000e+00 : f32
    %35 = vector.broadcast %cst_16 : f32 to vector<1x32xf32>
    %36 = arith.subf %35, %29 : vector<1x32xf32>
    %37 = arith.mulf %36, %34 : vector<1x32xf32>
    %38 = arith.mulf %29, %9 : vector<1x32xf32>
    %39 = arith.addf %37, %38 : vector<1x32xf32>
    %cst_17 = arith.constant dense<0.000000e+00> : vector<1x128xf32>
    %40 = tpu.matmul %39, %3, %cst_17 {dimension_numbers = #tpu.dot_dimension_numbers<[1], [0], [0], [1], [0, 0, 1, 1], [], []>} : vector<1x32xf32>, vector<32x128xf32>, vector<1x128xf32> -> vector<1x128xf32>
    %41 = arith.addf %40, %5 : vector<1x128xf32>
    %cst_18 = arith.constant dense<0.000000e+00> : vector<1x128xf32>
    %42 = tpu.matmul %39, %4, %cst_18 {dimension_numbers = #tpu.dot_dimension_numbers<[1], [0], [0], [1], [0, 0, 1, 1], [], []>} : vector<1x32xf32>, vector<32x128xf32>, vector<1x128xf32> -> vector<1x128xf32>
    %43 = arith.addf %42, %6 : vector<1x128xf32>
    %44 = vector.extract_strided_slice %41 {offsets = [0, 0], sizes = [1, 32], strides = [1, 1]} : vector<1x128xf32> to vector<1x32xf32>
    %45 = vector.extract_strided_slice %43 {offsets = [0, 0], sizes = [1, 32], strides = [1, 1]} : vector<1x128xf32> to vector<1x32xf32>
    %46 = arith.addf %44, %45 : vector<1x32xf32>
    %47 = arith.negf %46 : vector<1x32xf32>
    %48 = math.exp %47 : vector<1x32xf32>
    %cst_19 = arith.constant 1.000000e+00 : f32
    %49 = vector.broadcast %cst_19 : f32 to vector<1x32xf32>
    %50 = arith.addf %49, %48 : vector<1x32xf32>
    %51 = arith.divf %49, %50 : vector<1x32xf32>
    %52 = vector.extract_strided_slice %41 {offsets = [0, 32], sizes = [1, 32], strides = [1, 1]} : vector<1x128xf32> to vector<1x32xf32>
    %53 = vector.extract_strided_slice %43 {offsets = [0, 32], sizes = [1, 32], strides = [1, 1]} : vector<1x128xf32> to vector<1x32xf32>
    %54 = arith.addf %52, %53 : vector<1x32xf32>
    %55 = arith.negf %54 : vector<1x32xf32>
    %56 = math.exp %55 : vector<1x32xf32>
    %cst_20 = arith.constant 1.000000e+00 : f32
    %57 = vector.broadcast %cst_20 : f32 to vector<1x32xf32>
    %58 = arith.addf %57, %56 : vector<1x32xf32>
    %59 = arith.divf %57, %58 : vector<1x32xf32>
    %60 = vector.extract_strided_slice %41 {offsets = [0, 64], sizes = [1, 32], strides = [1, 1]} : vector<1x128xf32> to vector<1x32xf32>
    %61 = vector.extract_strided_slice %43 {offsets = [0, 64], sizes = [1, 32], strides = [1, 1]} : vector<1x128xf32> to vector<1x32xf32>
    %62 = arith.mulf %51, %61 : vector<1x32xf32>
    %63 = arith.addf %60, %62 : vector<1x32xf32>
    %64 = math.tanh %63 : vector<1x32xf32>
    %cst_21 = arith.constant 1.000000e+00 : f32
    %65 = vector.broadcast %cst_21 : f32 to vector<1x32xf32>
    %66 = arith.subf %65, %59 : vector<1x32xf32>
    %67 = arith.mulf %66, %64 : vector<1x32xf32>
    %68 = arith.mulf %59, %39 : vector<1x32xf32>
    %69 = arith.addf %67, %68 : vector<1x32xf32>
    %cst_22 = arith.constant dense<0.000000e+00> : vector<1x128xf32>
    %70 = tpu.matmul %69, %3, %cst_22 {dimension_numbers = #tpu.dot_dimension_numbers<[1], [0], [0], [1], [0, 0, 1, 1], [], []>} : vector<1x32xf32>, vector<32x128xf32>, vector<1x128xf32> -> vector<1x128xf32>
    %71 = arith.addf %70, %5 : vector<1x128xf32>
    %cst_23 = arith.constant dense<0.000000e+00> : vector<1x128xf32>
    %72 = tpu.matmul %69, %4, %cst_23 {dimension_numbers = #tpu.dot_dimension_numbers<[1], [0], [0], [1], [0, 0, 1, 1], [], []>} : vector<1x32xf32>, vector<32x128xf32>, vector<1x128xf32> -> vector<1x128xf32>
    %73 = arith.addf %72, %6 : vector<1x128xf32>
    %74 = vector.extract_strided_slice %71 {offsets = [0, 0], sizes = [1, 32], strides = [1, 1]} : vector<1x128xf32> to vector<1x32xf32>
    %75 = vector.extract_strided_slice %73 {offsets = [0, 0], sizes = [1, 32], strides = [1, 1]} : vector<1x128xf32> to vector<1x32xf32>
    %76 = arith.addf %74, %75 : vector<1x32xf32>
    %77 = arith.negf %76 : vector<1x32xf32>
    %78 = math.exp %77 : vector<1x32xf32>
    %cst_24 = arith.constant 1.000000e+00 : f32
    %79 = vector.broadcast %cst_24 : f32 to vector<1x32xf32>
    %80 = arith.addf %79, %78 : vector<1x32xf32>
    %81 = arith.divf %79, %80 : vector<1x32xf32>
    %82 = vector.extract_strided_slice %71 {offsets = [0, 32], sizes = [1, 32], strides = [1, 1]} : vector<1x128xf32> to vector<1x32xf32>
    %83 = vector.extract_strided_slice %73 {offsets = [0, 32], sizes = [1, 32], strides = [1, 1]} : vector<1x128xf32> to vector<1x32xf32>
    %84 = arith.addf %82, %83 : vector<1x32xf32>
    %85 = arith.negf %84 : vector<1x32xf32>
    %86 = math.exp %85 : vector<1x32xf32>
    %cst_25 = arith.constant 1.000000e+00 : f32
    %87 = vector.broadcast %cst_25 : f32 to vector<1x32xf32>
    %88 = arith.addf %87, %86 : vector<1x32xf32>
    %89 = arith.divf %87, %88 : vector<1x32xf32>
    %90 = vector.extract_strided_slice %71 {offsets = [0, 64], sizes = [1, 32], strides = [1, 1]} : vector<1x128xf32> to vector<1x32xf32>
    %91 = vector.extract_strided_slice %73 {offsets = [0, 64], sizes = [1, 32], strides = [1, 1]} : vector<1x128xf32> to vector<1x32xf32>
    %92 = arith.mulf %81, %91 : vector<1x32xf32>
    %93 = arith.addf %90, %92 : vector<1x32xf32>
    %94 = math.tanh %93 : vector<1x32xf32>
    %cst_26 = arith.constant 1.000000e+00 : f32
    %95 = vector.broadcast %cst_26 : f32 to vector<1x32xf32>
    %96 = arith.subf %95, %89 : vector<1x32xf32>
    %97 = arith.mulf %96, %94 : vector<1x32xf32>
    %98 = arith.mulf %89, %69 : vector<1x32xf32>
    %99 = arith.addf %97, %98 : vector<1x32xf32>
    %c0_27 = arith.constant 0 : index
    %c0_28 = arith.constant 0 : index
    %100 = vector.load %arg9[%c0_27, %c0_28] : memref<1x32xf32, #tpu.memory_space<vmem>>, vector<1x32xf32>
    tpu.vector_store %arg9[%c0_27, %c0_28], %99 {strides = array<i32>} : memref<1x32xf32, #tpu.memory_space<vmem>>, vector<1x32xf32>,
    %c0_29 = arith.constant 0 : index
    %c0_30 = arith.constant 0 : index
    %c0_31 = arith.constant 0 : index
    %101 = vector.load %arg8[%c0_29, %c0_30, %c0_31] : memref<1x1x32xf32, #tpu.memory_space<vmem>>, vector<1x1x32xf32>
    %102 = vector.shape_cast %101 : vector<1x1x32xf32> to vector<1x32xf32>
    %103 = vector.shape_cast %99 : vector<1x32xf32> to vector<1x1x32xf32>
    tpu.vector_store %arg8[%c0_29, %c0_30, %c0_31], %103 {strides = array<i32>} : memref<1x1x32xf32, #tpu.memory_space<vmem>>, vector<1x1x32xf32>,
    return
  }
  func.func @transform_0(%arg0: i32, %arg1: memref<8xi32, #tpu.memory_space<smem>>) -> (i32, i32, i32) {
    %0 = arith.index_cast %arg0 : i32 to index
    %1 = memref.load %arg1[%0] : memref<8xi32, #tpu.memory_space<smem>>
    %c0_i32 = arith.constant 0 : i32
    %c0_i32_0 = arith.constant 0 : i32
    %c0_i32_1 = arith.constant 0 : i32
    return %1, %c0_i32, %c0_i32_0 : i32, i32, i32
  }
  func.func @transform_1(%arg0: i32, %arg1: memref<8xi32, #tpu.memory_space<smem>>) -> (i32, i32) {
    %c0_i32 = arith.constant 0 : i32
    %c0_i32_0 = arith.constant 0 : i32
    %c0_i32_1 = arith.constant 0 : i32
    return %c0_i32, %c0_i32_0 : i32, i32
  }
  func.func @transform_2(%arg0: i32, %arg1: memref<8xi32, #tpu.memory_space<smem>>) -> (i32, i32) {
    %c0_i32 = arith.constant 0 : i32
    %c0_i32_0 = arith.constant 0 : i32
    %c0_i32_1 = arith.constant 0 : i32
    return %c0_i32, %c0_i32_0 : i32, i32
  }
  func.func @transform_3(%arg0: i32, %arg1: memref<8xi32, #tpu.memory_space<smem>>) -> (i32, i32) {
    %c0_i32 = arith.constant 0 : i32
    %c0_i32_0 = arith.constant 0 : i32
    %c0_i32_1 = arith.constant 0 : i32
    return %c0_i32, %c0_i32_0 : i32, i32
  }
  func.func @transform_4(%arg0: i32, %arg1: memref<8xi32, #tpu.memory_space<smem>>) -> (i32, i32) {
    %c0_i32 = arith.constant 0 : i32
    %c0_i32_0 = arith.constant 0 : i32
    %c0_i32_1 = arith.constant 0 : i32
    return %c0_i32, %c0_i32_0 : i32, i32
  }
  func.func @transform_5(%arg0: i32, %arg1: memref<8xi32, #tpu.memory_space<smem>>) -> (i32, i32) {
    %c0_i32 = arith.constant 0 : i32
    %c0_i32_0 = arith.constant 0 : i32
    %c0_i32_1 = arith.constant 0 : i32
    return %c0_i32, %c0_i32_0 : i32, i32
  }
  func.func @transform_6(%arg0: i32, %arg1: memref<8xi32, #tpu.memory_space<smem>>) -> (i32, i32, i32) {
    %c0_i32 = arith.constant 0 : i32
    %c0_i32_0 = arith.constant 0 : i32
    %c0_i32_1 = arith.constant 0 : i32
    return %arg0, %c0_i32, %c0_i32_0 : i32, i32, i32
  }
}

</mosaic_0001>

<llo_original>
// kernel: tpu_custom_call.1
$region0: #{tpu_custom_call.1}
  #allocation0 [shape = 'u32[]', space=smem, size = 0x4, offset = 0x4, fixed_abs, tag = 'smem constant byte address 0x4 - core index']
  #allocation1 [shape = 'u32[144,128]{1,0:T(1,128)}', space=vmem, size = 0x12000, scoped, tag = 'internal scratch']
  #allocation2 [shape = 'f32[1,32]{1,0:T(1,128)}', space=vmem, size = 0x200, scoped, tag = 'scratch operand']
  #allocation3 [shape = 's32[1]{0}', space=sflag, size = 0x4, scoped, tag = 'scoped memory for tpu_custom_call.1']
  #allocation4 [shape = 'u8[512]{0}', space=smem, size = 0x200, scoped, tag = 'prefetched SMEM operand 0']
  %s0 = inlined_call_operand.hbm [shape: s32[8], index: 0, kind: input, shape index: {}]
  %s1 = inlined_call_operand.hbm [shape: f32[10,1,32], index: 1, kind: input, shape index: {}]
  %s2 = inlined_call_operand.vmem [shape: f32[1,32], index: 2, kind: input, shape index: {}]
  %s3 = inlined_call_operand.hbm [shape: f32[32,128], index: 3, kind: input, shape index: {}]
  %s4 = inlined_call_operand.hbm [shape: f32[32,128], index: 4, kind: input, shape index: {}]
  %s5 = inlined_call_operand.vmem [shape: f32[1,128], index: 5, kind: input, shape index: {}]
  %s6 = inlined_call_operand.vmem [shape: f32[1,128], index: 6, kind: input, shape index: {}]
  %s7 = inlined_call_operand.hbm [shape: f32[8,1,32], index: 7, kind: output, shape index: {}]
  %s8 = sld [smem:[#allocation0]]
  $region73: #{tpu_custom_call.1} parent=0
    _
  %s10 = ssub.s32 1, %s8
  %s11 = scalar_select 0, %s10, %s8
  %13 = dma.hbm_to_smem %s0, 16, [#allocation4], [#allocation3]
  %14 = dma.done [#allocation3], 16
  %15 = sfence
  $region1: #{tpu_custom_call.1} parent=0
    #allocation5 [shape = 'u8[1024]{0}', space=vmem, size = 0x400, scoped, tag = 'input window, operand 1']
    #allocation6 [shape = 's32[2]{0}', space=sflag, size = 0x8, scoped, tag = 'scoped memory for tpu_custom_call.1']
    #allocation7 [shape = 's32[2]{0}', space=sflag, size = 0x8, scoped, tag = 'scoped memory for tpu_custom_call.1']
    #allocation8 [shape = 'u8[16384]{0}', space=vmem, size = 0x4000, scoped, tag = 'input window, operand 3, single buffered']
    #allocation9 [shape = 's32[1]{0}', space=sflag, size = 0x4, scoped, tag = 'scoped memory for tpu_custom_call.1']
    #allocation10 [shape = 'u8[16384]{0}', space=vmem, size = 0x4000, scoped, tag = 'input window, operand 4, single buffered']
    #allocation11 [shape = 'u8[1024]{0}', space=vmem, size = 0x400, scoped, tag = 'output window, operand 0']
    %16 = vsyncpa [#allocation6], 0
    %s17 = scalar_lea.sflag [#allocation6], 1
    %18 = vsyncpa %s17, 0
    %19 = vsyncpa [#allocation9], 0
    %20 = vsyncpa [#allocation7], 0
    %s21 = scalar_lea.sflag [#allocation7], 1
    %22 = vsyncpa %s21, 0
    loop: start=0, step=1, limit=10
    $region2: #{tpu_custom_call.1} parent=1 // loop_pre_header
      _
    $region3: #{tpu_custom_call.1} parent=1 // loop_header
      %s24 = sphi 0, %s28
      %p25 = scmp.ge.s32.totalorder %s24, 10
      %s36 = sphi 0, %s38
      %s39 = sphi 0, %s36
      %s40 = sphi 0, %s39
      %s56 = sphi 0, %s40
      %s60 = sphi 0, %s60
      %s62 = sphi 0, %s60
      %s63 = sphi 0, %s62
      %s77 = sphi 0, %s63
      %s81 = sphi 0, %s81
      %s83 = sphi 0, %s81
      %s84 = sphi 0, %s83
      %s98 = sphi 0, %s84
      %s102 = sphi 0, %s102
      %s104 = sphi 0, %s102
      %s105 = sphi 0, %s104
      %s119 = sphi 0, %s105
      %s123 = sphi 0, %s123
      %s125 = sphi 0, %s123
      %s126 = sphi 0, %s125
      %s140 = sphi 0, %s126
      %s144 = sphi 0, %s144
      %s146 = sphi 0, %s144
      %s147 = sphi 0, %s146
      %s161 = sphi 0, %s147
      %s167 = sphi 0, %s169
      %s170 = sphi 0, %s167
      %s171 = sphi 0, %s170
      %s187 = sphi 0, %s171
    $region4: #{tpu_custom_call.1} parent=1 // loop_header_branch
      %27 = sbr.rel (%p25) target = $region8
    $region5: #{tpu_custom_call.1} parent=1 // loop_body
      %s29 = ssub.s32 %s24, 1
      %s30 = ssub.s32 %s24, 2
      %s31 = sadd.s32 %s24, 1
      %s32 = sld [smem:[#allocation4 + %s24]]
      %s33 = sld [smem:[#allocation4 + %s31]]
      %s34 = ssub.s32 %s32, %s33
      %p35 = scmp.eq.s32.totalorder %s34, 0
      %s37 = sadd.s32 %s36, 1
      %s38 = scalar_select %p35, %s36, %s37
      %p41 = pneg %p35
      %p42 = scmp.eq.s32.totalorder %s24, 7
      %p43 = por %p41, %p42
      %p44 = scmp.ne.s32.totalorder %s36, %s39
      %p45 = scmp.eq.s32.totalorder %s24, 0
      %p46 = por %p44, %p45
      %p47 = scmp.ne.s32.totalorder %s36, %s39
      %p48 = scmp.eq.s32.totalorder %s29, 7
      %p49 = por %p47, %p48
      %p50 = scmp.ne.s32.totalorder %s39, %s40
      %p51 = scmp.eq.s32.totalorder %s29, 0
      %p52 = por %p50, %p51
      %p53 = scmp.ne.s32.totalorder %s39, %s40
      %p54 = scmp.eq.s32.totalorder %s30, 7
      %p55 = por %p53, %p54
      %p57 = scmp.ne.s32.totalorder %s40, %s56
      %p58 = scmp.eq.s32.totalorder %s30, 0
      %p59 = por %p57, %p58
      %s61 = sadd.s32 %s60, 1
      %p64 = scmp.eq.s32.totalorder %s24, 7
      %p65 = scmp.ne.s32.totalorder %s60, %s62
      %p66 = scmp.eq.s32.totalorder %s24, 0
      %p67 = por %p65, %p66
      %p68 = scmp.ne.s32.totalorder %s60, %s62
      %p69 = scmp.eq.s32.totalorder %s29, 7
      %p70 = por %p68, %p69
      %p71 = scmp.ne.s32.totalorder %s62, %s63
      %p72 = scmp.eq.s32.totalorder %s29, 0
      %p73 = por %p71, %p72
      %p74 = scmp.ne.s32.totalorder %s62, %s63
      %p75 = scmp.eq.s32.totalorder %s30, 7
      %p76 = por %p74, %p75
      %p78 = scmp.ne.s32.totalorder %s63, %s77
      %p79 = scmp.eq.s32.totalorder %s30, 0
      %p80 = por %p78, %p79
      %s82 = sadd.s32 %s81, 1
      %p85 = scmp.eq.s32.totalorder %s24, 7
      %p86 = scmp.ne.s32.totalorder %s81, %s83
      %p87 = scmp.eq.s32.totalorder %s24, 0
      %p88 = por %p86, %p87
      %p89 = scmp.ne.s32.totalorder %s81, %s83
      %p90 = scmp.eq.s32.totalorder %s29, 7
      %p91 = por %p89, %p90
      %p92 = scmp.ne.s32.totalorder %s83, %s84
      %p93 = scmp.eq.s32.totalorder %s29, 0
      %p94 = por %p92, %p93
      %p95 = scmp.ne.s32.totalorder %s83, %s84
      %p96 = scmp.eq.s32.totalorder %s30, 7
      %p97 = por %p95, %p96
      %p99 = scmp.ne.s32.totalorder %s84, %s98
      %p100 = scmp.eq.s32.totalorder %s30, 0
      %p101 = por %p99, %p100
      %s103 = sadd.s32 %s102, 1
      %p106 = scmp.eq.s32.totalorder %s24, 7
      %p107 = scmp.ne.s32.totalorder %s102, %s104
      %p108 = scmp.eq.s32.totalorder %s24, 0
      %p109 = por %p107, %p108
      %p110 = scmp.ne.s32.totalorder %s102, %s104
      %p111 = scmp.eq.s32.totalorder %s29, 7
      %p112 = por %p110, %p111
      %p113 = scmp.ne.s32.totalorder %s104, %s105
      %p114 = scmp.eq.s32.totalorder %s29, 0
      %p115 = por %p113, %p114
      %p116 = scmp.ne.s32.totalorder %s104, %s105
      %p117 = scmp.eq.s32.totalorder %s30, 7
      %p118 = por %p116, %p117
      %p120 = scmp.ne.s32.totalorder %s105, %s119
      %p121 = scmp.eq.s32.totalorder %s30, 0
      %p122 = por %p120, %p121
      %s124 = sadd.s32 %s123, 1
      %p127 = scmp.eq.s32.totalorder %s24, 7
      %p128 = scmp.ne.s32.totalorder %s123, %s125
      %p129 = scmp.eq.s32.totalorder %s24, 0
      %p130 = por %p128, %p129
      %p131 = scmp.ne.s32.totalorder %s123, %s125
      %p132 = scmp.eq.s32.totalorder %s29, 7
      %p133 = por %p131, %p132
      %p134 = scmp.ne.s32.totalorder %s125, %s126
      %p135 = scmp.eq.s32.totalorder %s29, 0
      %p136 = por %p134, %p135
      %p137 = scmp.ne.s32.totalorder %s125, %s126
      %p138 = scmp.eq.s32.totalorder %s30, 7
      %p139 = por %p137, %p138
      %p141 = scmp.ne.s32.totalorder %s126, %s140
      %p142 = scmp.eq.s32.totalorder %s30, 0
      %p143 = por %p141, %p142
      %s145 = sadd.s32 %s144, 1
      %p148 = scmp.eq.s32.totalorder %s24, 7
      %p149 = scmp.ne.s32.totalorder %s144, %s146
      %p150 = scmp.eq.s32.totalorder %s24, 0
      %p151 = por %p149, %p150
      %p152 = scmp.ne.s32.totalorder %s144, %s146
      %p153 = scmp.eq.s32.totalorder %s29, 7
      %p154 = por %p152, %p153
      %p155 = scmp.ne.s32.totalorder %s146, %s147
      %p156 = scmp.eq.s32.totalorder %s29, 0
      %p157 = por %p155, %p156
      %p158 = scmp.ne.s32.totalorder %s146, %s147
      %p159 = scmp.eq.s32.totalorder %s30, 7
      %p160 = por %p158, %p159
      %p162 = scmp.ne.s32.totalorder %s147, %s161
      %p163 = scmp.eq.s32.totalorder %s30, 0
      %p164 = por %p162, %p163
      %s165 = ssub.s32 %s24, %s31
      %p166 = scmp.eq.s32.totalorder %s165, 0
      %s168 = sadd.s32 %s167, 1
      %s169 = scalar_select %p166, %s167, %s168
      %p172 = pneg %p166
      %p173 = scmp.eq.s32.totalorder %s24, 7
      %p174 = por %p172, %p173
      %p175 = scmp.ne.s32.totalorder %s167, %s170
      %p176 = scmp.eq.s32.totalorder %s24, 0
      %p177 = por %p175, %p176
      %p178 = scmp.ne.s32.totalorder %s167, %s170
      %p179 = scmp.eq.s32.totalorder %s29, 7
      %p180 = por %p178, %p179
      %p181 = scmp.ne.s32.totalorder %s170, %s171
      %p182 = scmp.eq.s32.totalorder %s29, 0
      %p183 = por %p181, %p182
      %p184 = scmp.ne.s32.totalorder %s170, %s171
      %p185 = scmp.eq.s32.totalorder %s30, 7
      %p186 = por %p184, %p185
      %p188 = scmp.ne.s32.totalorder %s171, %s187
      %p189 = scmp.eq.s32.totalorder %s30, 0
      %p190 = por %p188, %p189
      %p191 = scmp.le.s32.totalorder 1, %s24
      %p192 = scmp.lt.s32.totalorder %s24, 9
      %p193 = pnand %p191, %p192
      %p194 = pneg %p193
      // Predicated region
      $region9: #{tpu_custom_call.1} parent=5 // pred_check
        _
      $region10: #{tpu_custom_call.1} parent=5 // pred_check_branch
        %196 = sbr.rel (%p193) target = $region12
      $region11: #{tpu_custom_call.1} parent=5 // pred_region
        %s197 = ssub.s32 %s24, 1
        // Predicated region
        $region13: #{tpu_custom_call.1} parent=11 // pred_check
          %p198 = pneg %p73
        $region14: #{tpu_custom_call.1} parent=11 // pred_check_branch
          %200 = sbr.rel (%p198) target = $region16
        $region15: #{tpu_custom_call.1} parent=11 // pred_region
          _
        $region16: #{tpu_custom_call.1} parent=11 // pred_fallthru
          _
        // Predicated region
        $region17: #{tpu_custom_call.1} parent=11 // pred_check
          %p201 = pneg %p94
        $region18: #{tpu_custom_call.1} parent=11 // pred_check_branch
          %203 = sbr.rel (%p201) target = $region20
        $region19: #{tpu_custom_call.1} parent=11 // pred_region
          %s205 = ssub.s32 512, 512
          %206 = vsyncadd [#allocation9], %s205
          %s207 = sshll.u32 [#allocation8], 4
          %s208 = int_to_ptr.vmem [resolvable:$true] %s207
          %213 = dma.hbm_to_vmem [thread:$0]  %s3, 512, %s208, [#allocation9], 128, 128, 8
        $region20: #{tpu_custom_call.1} parent=11 // pred_fallthru
          _
        // Predicated region
        $region21: #{tpu_custom_call.1} parent=11 // pred_check
          %p214 = pneg %p115
        $region22: #{tpu_custom_call.1} parent=11 // pred_check_branch
          %216 = sbr.rel (%p214) target = $region24
        $region23: #{tpu_custom_call.1} parent=11 // pred_region
          %s218 = ssub.s32 512, 512
          %219 = vsyncadd [#allocation9], %s218
          %s220 = sshll.u32 [#allocation10], 4
          %s221 = int_to_ptr.vmem [resolvable:$true] %s220
          %226 = dma.hbm_to_vmem [thread:$0]  %s4, 512, %s221, [#allocation9], 128, 128, 8
        $region24: #{tpu_custom_call.1} parent=11 // pred_fallthru
          _
        // Predicated region
        $region25: #{tpu_custom_call.1} parent=11 // pred_check
          %p227 = pneg %p136
        $region26: #{tpu_custom_call.1} parent=11 // pred_check_branch
          %229 = sbr.rel (%p227) target = $region28
        $region27: #{tpu_custom_call.1} parent=11 // pred_region
          _
        $region28: #{tpu_custom_call.1} parent=11 // pred_fallthru
          _
        // Predicated region
        $region29: #{tpu_custom_call.1} parent=11 // pred_check
          %p230 = pneg %p157
        $region30: #{tpu_custom_call.1} parent=11 // pred_check_branch
          %232 = sbr.rel (%p230) target = $region32
        $region31: #{tpu_custom_call.1} parent=11 // pred_region
          _
        $region32: #{tpu_custom_call.1} parent=11 // pred_fallthru
          _
      $region12: #{tpu_custom_call.1} parent=5 // pred_fallthru
        _
      %p233 = scmp.lt.s32.totalorder %s24, 8
      // Predicated region
      $region33: #{tpu_custom_call.1} parent=5 // pred_check
        %p234 = pneg %p233
      $region34: #{tpu_custom_call.1} parent=5 // pred_check_branch
        %236 = sbr.rel (%p234) target = $region36
      $region35: #{tpu_custom_call.1} parent=5 // pred_region
        // Predicated region
        $region37: #{tpu_custom_call.1} parent=35 // pred_check
          %p237 = pneg %p46
        $region38: #{tpu_custom_call.1} parent=35 // pred_check_branch
          %239 = sbr.rel (%p237) target = $region40
        $region39: #{tpu_custom_call.1} parent=35 // pred_region
          %s240 = sand.u32 %s36, 1
          %s241 = scalar_lea.sflag [#allocation6], %s240
          %s242 = sand.u32 %s36, 1
          %s243 = scalar_lea.vmem [#allocation5], %s242
          %s244 = sld [smem:[#allocation4 + %s24]]
          %s246 = ssub.s32 16, 16
          %247 = vsyncadd %s241, %s246
          %s248 = smul.addr %s244, 16
          %s249 = scalar_lea.hbm %s1, %s248
          %s251 = sshll.u32 %s243, 4
          %s252 = int_to_ptr.vmem [resolvable:$true] %s251
          %254 = dma.hbm_to_vmem [thread:$0]  %s249, 16, %s252, %s241
        $region40: #{tpu_custom_call.1} parent=35 // pred_fallthru
          _
      $region36: #{tpu_custom_call.1} parent=5 // pred_fallthru
        _
      %p255 = scmp.le.s32.totalorder 1, %s24
      %p256 = scmp.lt.s32.totalorder %s24, 9
      %p257 = pnand %p255, %p256
      %p258 = pneg %p257
      // Predicated region
      $region41: #{tpu_custom_call.1} parent=5 // pred_check
        _
      $region42: #{tpu_custom_call.1} parent=5 // pred_check_branch
        %260 = sbr.rel (%p257) target = $region44
      $region43: #{tpu_custom_call.1} parent=5 // pred_region
        %s261 = ssub.s32 %s24, 1
        %s262 = sand.u32 %s39, 1
        %s263 = scalar_lea.sflag [#allocation6], %s262
        %s264 = sand.u32 %s39, 1
        %s265 = scalar_lea.vmem [#allocation5], %s264
        // Predicated region
        $region45: #{tpu_custom_call.1} parent=43 // pred_check
          %p266 = pneg %p52
        $region46: #{tpu_custom_call.1} parent=43 // pred_check_branch
          %268 = sbr.rel (%p266) target = $region48
        $region47: #{tpu_custom_call.1} parent=43 // pred_region
          %269 = dma.done %s263, 16
        $region48: #{tpu_custom_call.1} parent=43 // pred_fallthru
          _
        // Predicated region
        $region49: #{tpu_custom_call.1} parent=43 // pred_check
          %p270 = pneg %p94
        $region50: #{tpu_custom_call.1} parent=43 // pred_check_branch
          %272 = sbr.rel (%p270) target = $region52
        $region51: #{tpu_custom_call.1} parent=43 // pred_region
          %273 = dma.done [#allocation9], 512
        $region52: #{tpu_custom_call.1} parent=43 // pred_fallthru
          _
        // Predicated region
        $region53: #{tpu_custom_call.1} parent=43 // pred_check
          %p274 = pneg %p115
        $region54: #{tpu_custom_call.1} parent=43 // pred_check_branch
          %276 = sbr.rel (%p274) target = $region56
        $region55: #{tpu_custom_call.1} parent=43 // pred_region
          %277 = dma.done [#allocation9], 512
        $region56: #{tpu_custom_call.1} parent=43 // pred_fallthru
          _
        %s278 = sand.u32 %s39, 1
        %s279 = scalar_lea.sflag [#allocation6], %s278
        %s280 = sand.u32 %s39, 1
        %s281 = scalar_lea.vmem [#allocation5], %s280
        %p282 = pneg %p52
        %p283 = pneg %p49
        %p284 = pneg %p73
        %p285 = pneg %p70
        %p286 = pneg %p94
        %p287 = pneg %p91
        %p288 = pneg %p115
        %p289 = pneg %p112
        %p290 = pneg %p136
        %p291 = pneg %p133
        %p292 = pneg %p157
        %p293 = pneg %p154
        %p294 = pneg %p183
        %p295 = pneg %p180
        %s296 = sand.u32 %s170, 1
        %s297 = scalar_lea.sflag [#allocation7], %s296
        %s298 = sand.u32 %s170, 1
        %s299 = scalar_lea.vmem [#allocation11], %s298
        %s300 = sld [smem:[#allocation4 + %s29]]
        %p301 = scmp.eq.s32.totalorder %s29, 0
        // Predicated region
        $region57: #{tpu_custom_call.1} parent=43 // pred_check
          %p302 = pneg %p301
        $region58: #{tpu_custom_call.1} parent=43 // pred_check_branch
          %304 = sbr.rel (%p302) target = $region60
        $region59: #{tpu_custom_call.1} parent=43 // pred_region
          %v305 = vld [vmem:[%s2] sm:$0x1]
          %vm306 = vcmask 253952
          %307 = vst.msk [vmem:[#allocation2] sm:$0x1] %vm306, %v305
        $region60: #{tpu_custom_call.1} parent=43 // pred_fallthru
          _
        %v308 = vld [vmem:[#allocation8] sm:$0xff]
        %v309 = vld [vmem:[#allocation8 + $0x8] sm:$0xff]
        %v310 = vld [vmem:[#allocation8 + $0x10] sm:$0xff]
        %v311 = vld [vmem:[#allocation8 + $0x18] sm:$0xff]
        %v312 = vld [vmem:[#allocation10] sm:$0xff]
        %v313 = vld [vmem:[#allocation10 + $0x8] sm:$0xff]
        %v314 = vld [vmem:[#allocation10 + $0x10] sm:$0xff]
        %v315 = vld [vmem:[#allocation10 + $0x18] sm:$0xff]
        %v316 = vld [vmem:[%s5] sm:$0x1]
        %v317 = vld [vmem:[%s6] sm:$0x1]
        %v318 = vld [vmem:[%s265] sm:$0x1]
        %v319 = vld [vmem:[#allocation2] sm:$0x1]
        %vm320 = vcmask 261120
        %v322 = vsel %vm320, %v318, 0
        %324 = vmatprep.subr.mxu0 0.0
        %325 = vmatpush1.msra.mxu0 %v308
        %326 = vmatprep.subr.mxu0 0.0
        %327 = vmatpush1.msra.mxu0 %v309
        %328 = vmatprep.subr.mxu0 0.0
        %329 = vmatpush1.msra.mxu0 %v310
        %330 = vmatprep.subr.mxu0 0.0
        %331 = vmatpush1.msra.mxu0 %v311
        %332 = vmatprep.subr.mxu0 0.0
        %333 = vmatpush1.msra.mxu0 0.0
        %334 = vmatprep.subr.mxu0 0.0
        %335 = vmatpush1.msra.mxu0 0.0
        %336 = vmatprep.subr.mxu0 0.0
        %337 = vmatpush1.msra.mxu0 0.0
        %338 = vmatprep.subr.mxu0 0.0
        %339 = vmatpush1.msra.mxu0 0.0
        %340 = vmatprep.subr.mxu0 0.0
        %341 = vmatpush1.msra.mxu0 0.0
        %342 = vmatprep.subr.mxu0 0.0
        %343 = vmatpush1.msra.mxu0 0.0
        %344 = vmatprep.subr.mxu0 0.0
        %345 = vmatpush1.msra.mxu0 0.0
        %346 = vmatprep.subr.mxu0 0.0
        %347 = vmatpush1.msra.mxu0 0.0
        %348 = vmatprep.subr.mxu0 0.0
        %349 = vmatpush1.msra.mxu0 0.0
        %350 = vmatprep.subr.mxu0 0.0
        %351 = vmatpush1.msra.mxu0 0.0
        %352 = vmatprep.subr.mxu0 0.0
        %353 = vmatpush1.msra.mxu0 0.0
        %354 = vmatprep.subr.mxu0 0.0
        %355 = vmatpush1.msra.mxu0 0.0
        %356 = vmatprep.subr.mxu0 0.0
        %357 = vmatpush1.msra.mxu0 0.0
        %358 = vmatprep.subr.mxu0 0.0
        %359 = vmatpush1.msra.mxu0 0.0
        %360 = vmatprep.subr.mxu0 0.0
        %361 = vmatpush1.msra.mxu0 0.0
        %362 = vmatprep.subr.mxu0 0.0
        %363 = vmatpush1.msra.mxu0 0.0
        %364 = vmatprep.subr.mxu0 0.0
        %365 = vmatpush1.msra.mxu0 0.0
        %366 = vmatprep.subr.mxu0 0.0
        %367 = vmatpush1.msra.mxu0 0.0
        %368 = vmatprep.subr.mxu0 0.0
        %369 = vmatpush1.msra.mxu0 0.0
        %370 = vmatprep.subr.mxu0 0.0
        %371 = vmatpush1.msra.mxu0 0.0
        %372 = vmatprep.subr.mxu0 0.0
        %373 = vmatpush1.msra.mxu0 0.0
        %374 = vmatprep.subr.mxu0 0.0
        %375 = vmatpush1.msra.mxu0 0.0
        %376 = vmatprep.subr.mxu0 0.0
        %377 = vmatpush1.msra.mxu0 0.0
        %378 = vmatprep.subr.mxu0 0.0
        %379 = vmatpush1.msra.mxu0 0.0
        %380 = vmatprep.subr.mxu0 0.0
        %381 = vmatpush1.msra.mxu0 0.0
        %382 = vmatprep.subr.mxu0 0.0
        %383 = vmatpush1.msra.mxu0 0.0
        %384 = vmatprep.subr.mxu0 0.0
        %385 = vmatpush1.msra.mxu0 0.0
        %386 = vmatprep.subr.mxu0 0.0
        %387 = vmatpush1.msra.mxu0 0.0
        %388 = vmatprep.mubr.f32.mxu0 0.0
        %389 = vmatmul.mubr.f32.gmra.mrb[0].mxu0 %v322
        %v390 = vpop.f32.mrb[0].mxu0
        %v391 = vadd.f32 %v316, %v390
        %v392 = vpop.f32.mrb[0].mxu0
        %393 = vdwg.mxu0
        %v395 = vsel %vm320, %v319, 0
        %397 = vmatprep.subr.mxu0 0.0
        %398 = vmatpush1.msra.mxu0 %v312
        %399 = vmatprep.subr.mxu0 0.0
        %400 = vmatpush1.msra.mxu0 %v313
        %401 = vmatprep.subr.mxu0 0.0
        %402 = vmatpush1.msra.mxu0 %v314
        %403 = vmatprep.subr.mxu0 0.0
        %404 = vmatpush1.msra.mxu0 %v315
        %405 = vmatprep.subr.mxu0 0.0
        %406 = vmatpush1.msra.mxu0 0.0
        %407 = vmatprep.subr.mxu0 0.0
        %408 = vmatpush1.msra.mxu0 0.0
        %409 = vmatprep.subr.mxu0 0.0
        %410 = vmatpush1.msra.mxu0 0.0
        %411 = vmatprep.subr.mxu0 0.0
        %412 = vmatpush1.msra.mxu0 0.0
        %413 = vmatprep.subr.mxu0 0.0
        %414 = vmatpush1.msra.mxu0 0.0
        %415 = vmatprep.subr.mxu0 0.0
        %416 = vmatpush1.msra.mxu0 0.0
        %417 = vmatprep.subr.mxu0 0.0
        %418 = vmatpush1.msra.mxu0 0.0
        %419 = vmatprep.subr.mxu0 0.0
        %420 = vmatpush1.msra.mxu0 0.0
        %421 = vmatprep.subr.mxu0 0.0
        %422 = vmatpush1.msra.mxu0 0.0
        %423 = vmatprep.subr.mxu0 0.0
        %424 = vmatpush1.msra.mxu0 0.0
        %425 = vmatprep.subr.mxu0 0.0
        %426 = vmatpush1.msra.mxu0 0.0
        %427 = vmatprep.subr.mxu0 0.0
        %428 = vmatpush1.msra.mxu0 0.0
        %429 = vmatprep.subr.mxu0 0.0
        %430 = vmatpush1.msra.mxu0 0.0
        %431 = vmatprep.subr.mxu0 0.0
        %432 = vmatpush1.msra.mxu0 0.0
        %433 = vmatprep.subr.mxu0 0.0
        %434 = vmatpush1.msra.mxu0 0.0
        %435 = vmatprep.subr.mxu0 0.0
        %436 = vmatpush1.msra.mxu0 0.0
        %437 = vmatprep.subr.mxu0 0.0
        %438 = vmatpush1.msra.mxu0 0.0
        %439 = vmatprep.subr.mxu0 0.0
        %440 = vmatpush1.msra.mxu0 0.0
        %441 = vmatprep.subr.mxu0 0.0
        %442 = vmatpush1.msra.mxu0 0.0
        %443 = vmatprep.subr.mxu0 0.0
        %444 = vmatpush1.msra.mxu0 0.0
        %445 = vmatprep.subr.mxu0 0.0
        %446 = vmatpush1.msra.mxu0 0.0
        %447 = vmatprep.subr.mxu0 0.0
        %448 = vmatpush1.msra.mxu0 0.0
        %449 = vmatprep.subr.mxu0 0.0
        %450 = vmatpush1.msra.mxu0 0.0
        %451 = vmatprep.subr.mxu0 0.0
        %452 = vmatpush1.msra.mxu0 0.0
        %453 = vmatprep.subr.mxu0 0.0
        %454 = vmatpush1.msra.mxu0 0.0
        %455 = vmatprep.subr.mxu0 0.0
        %456 = vmatpush1.msra.mxu0 0.0
        %457 = vmatprep.subr.mxu0 0.0
        %458 = vmatpush1.msra.mxu0 0.0
        %459 = vmatprep.subr.mxu0 0.0
        %460 = vmatpush1.msra.mxu0 0.0
        %461 = vmatprep.mubr.f32.mxu0 0.0
        %462 = vmatmul.mubr.f32.gmra.mrb[0].mxu0 %v395
        %v463 = vpop.f32.mrb[0].mxu0
        %v464 = vadd.f32 %v317, %v463
        %v465 = vpop.f32.mrb[0].mxu0
        %466 = vdwg.mxu0
        %v467 = vadd.f32 %v391, %v464
        %v468 = vxor.u32 %v467, 2147483648
        %v469 = vmul.f32 %v468, 1.442695
        %v470 = vpow.pop %v469
        %v471 = vadd.f32 %v470, 1.0
        %v472 = vrcp.pop %v471
        %v473 = vmul.f32 1.0, %v472
        %475 = vrot.lane.b32.xlu0 %v464, 64
        %v476 = vpop.permute.xlu0 %475
        %v478 = vmul.f32 %v473, %v476
        %480 = vrot.lane.b32.xlu0 %v478, 64
        %v481 = vpop.permute.xlu0 %480
        %v483 = vadd.f32 %v391, %v481
        %v484 = vtanh.pop %v483
        %v485 = vsub.f32 1.0, %v473
        %487 = vrot.lane.b32.xlu0 %v484, 96
        %v488 = vpop.permute.xlu0 %487
        %v490 = vmul.f32 %v485, %v488
        %v491 = vlaneseq
        %v492 = vshrl.u32 %v491, 7
        %v493 = vsub.s32 0, %v492
        %v494 = vrot.slane %v319, %v493
        %495 = vrot.lane.b32.xlu0 %v494, 32
        %v496 = vpop.permute.xlu0 %495
        %v498 = vmul.f32 %v473, %v496
        %v499 = vadd.f32 %v490, %v498
        %501 = vrot.lane.b32.xlu0 %v499, 96
        %v502 = vpop.permute.xlu0 %501
        %v503 = vsel %vm320, %v502, 0
        %505 = vmatprep.subr.mxu0 0.0
        %506 = vmatpush1.msra.mxu0 %v308
        %507 = vmatprep.subr.mxu0 0.0
        %508 = vmatpush1.msra.mxu0 %v309
        %509 = vmatprep.subr.mxu0 0.0
        %510 = vmatpush1.msra.mxu0 %v310
        %511 = vmatprep.subr.mxu0 0.0
        %512 = vmatpush1.msra.mxu0 %v311
        %513 = vmatprep.subr.mxu0 0.0
        %514 = vmatpush1.msra.mxu0 0.0
        %515 = vmatprep.subr.mxu0 0.0
        %516 = vmatpush1.msra.mxu0 0.0
        %517 = vmatprep.subr.mxu0 0.0
        %518 = vmatpush1.msra.mxu0 0.0
        %519 = vmatprep.subr.mxu0 0.0
        %520 = vmatpush1.msra.mxu0 0.0
        %521 = vmatprep.subr.mxu0 0.0
        %522 = vmatpush1.msra.mxu0 0.0
        %523 = vmatprep.subr.mxu0 0.0
        %524 = vmatpush1.msra.mxu0 0.0
        %525 = vmatprep.subr.mxu0 0.0
        %526 = vmatpush1.msra.mxu0 0.0
        %527 = vmatprep.subr.mxu0 0.0
        %528 = vmatpush1.msra.mxu0 0.0
        %529 = vmatprep.subr.mxu0 0.0
        %530 = vmatpush1.msra.mxu0 0.0
        %531 = vmatprep.subr.mxu0 0.0
        %532 = vmatpush1.msra.mxu0 0.0
        %533 = vmatprep.subr.mxu0 0.0
        %534 = vmatpush1.msra.mxu0 0.0
        %535 = vmatprep.subr.mxu0 0.0
        %536 = vmatpush1.msra.mxu0 0.0
        %537 = vmatprep.subr.mxu0 0.0
        %538 = vmatpush1.msra.mxu0 0.0
        %539 = vmatprep.subr.mxu0 0.0
        %540 = vmatpush1.msra.mxu0 0.0
        %541 = vmatprep.subr.mxu0 0.0
        %542 = vmatpush1.msra.mxu0 0.0
        %543 = vmatprep.subr.mxu0 0.0
        %544 = vmatpush1.msra.mxu0 0.0
        %545 = vmatprep.subr.mxu0 0.0
        %546 = vmatpush1.msra.mxu0 0.0
        %547 = vmatprep.subr.mxu0 0.0
        %548 = vmatpush1.msra.mxu0 0.0
        %549 = vmatprep.subr.mxu0 0.0
        %550 = vmatpush1.msra.mxu0 0.0
        %551 = vmatprep.subr.mxu0 0.0
        %552 = vmatpush1.msra.mxu0 0.0
        %553 = vmatprep.subr.mxu0 0.0
        %554 = vmatpush1.msra.mxu0 0.0
        %555 = vmatprep.subr.mxu0 0.0
        %556 = vmatpush1.msra.mxu0 0.0
        %557 = vmatprep.subr.mxu0 0.0
        %558 = vmatpush1.msra.mxu0 0.0
        %559 = vmatprep.subr.mxu0 0.0
        %560 = vmatpush1.msra.mxu0 0.0
        %561 = vmatprep.subr.mxu0 0.0
        %562 = vmatpush1.msra.mxu0 0.0
        %563 = vmatprep.subr.mxu0 0.0
        %564 = vmatpush1.msra.mxu0 0.0
        %565 = vmatprep.subr.mxu0 0.0
        %566 = vmatpush1.msra.mxu0 0.0
        %567 = vmatprep.subr.mxu0 0.0
        %568 = vmatpush1.msra.mxu0 0.0
        %569 = vmatprep.mubr.f32.mxu0 0.0
        %570 = vmatmul.mubr.f32.gmra.mrb[0].mxu0 %v503
        %v571 = vpop.f32.mrb[0].mxu0
        %v572 = vadd.f32 %v316, %v571
        %v573 = vpop.f32.mrb[0].mxu0
        %574 = vdwg.mxu0
        %575 = vmatprep.subr.mxu0 0.0
        %576 = vmatpush1.msra.mxu0 %v312
        %577 = vmatprep.subr.mxu0 0.0
        %578 = vmatpush1.msra.mxu0 %v313
        %579 = vmatprep.subr.mxu0 0.0
        %580 = vmatpush1.msra.mxu0 %v314
        %581 = vmatprep.subr.mxu0 0.0
        %582 = vmatpush1.msra.mxu0 %v315
        %583 = vmatprep.subr.mxu0 0.0
        %584 = vmatpush1.msra.mxu0 0.0
        %585 = vmatprep.subr.mxu0 0.0
        %586 = vmatpush1.msra.mxu0 0.0
        %587 = vmatprep.subr.mxu0 0.0
        %588 = vmatpush1.msra.mxu0 0.0
        %589 = vmatprep.subr.mxu0 0.0
        %590 = vmatpush1.msra.mxu0 0.0
        %591 = vmatprep.subr.mxu0 0.0
        %592 = vmatpush1.msra.mxu0 0.0
        %593 = vmatprep.subr.mxu0 0.0
        %594 = vmatpush1.msra.mxu0 0.0
        %595 = vmatprep.subr.mxu0 0.0
        %596 = vmatpush1.msra.mxu0 0.0
        %597 = vmatprep.subr.mxu0 0.0
        %598 = vmatpush1.msra.mxu0 0.0
        %599 = vmatprep.subr.mxu0 0.0
        %600 = vmatpush1.msra.mxu0 0.0
        %601 = vmatprep.subr.mxu0 0.0
        %602 = vmatpush1.msra.mxu0 0.0
        %603 = vmatprep.subr.mxu0 0.0
        %604 = vmatpush1.msra.mxu0 0.0
        %605 = vmatprep.subr.mxu0 0.0
        %606 = vmatpush1.msra.mxu0 0.0
        %607 = vmatprep.subr.mxu0 0.0
        %608 = vmatpush1.msra.mxu0 0.0
        %609 = vmatprep.subr.mxu0 0.0
        %610 = vmatpush1.msra.mxu0 0.0
        %611 = vmatprep.subr.mxu0 0.0
        %612 = vmatpush1.msra.mxu0 0.0
        %613 = vmatprep.subr.mxu0 0.0
        %614 = vmatpush1.msra.mxu0 0.0
        %615 = vmatprep.subr.mxu0 0.0
        %616 = vmatpush1.msra.mxu0 0.0
        %617 = vmatprep.subr.mxu0 0.0
        %618 = vmatpush1.msra.mxu0 0.0
        %619 = vmatprep.subr.mxu0 0.0
        %620 = vmatpush1.msra.mxu0 0.0
        %621 = vmatprep.subr.mxu0 0.0
        %622 = vmatpush1.msra.mxu0 0.0
        %623 = vmatprep.subr.mxu0 0.0
        %624 = vmatpush1.msra.mxu0 0.0
        %625 = vmatprep.subr.mxu0 0.0
        %626 = vmatpush1.msra.mxu0 0.0
        %627 = vmatprep.subr.mxu0 0.0
        %628 = vmatpush1.msra.mxu0 0.0
        %629 = vmatprep.subr.mxu0 0.0
        %630 = vmatpush1.msra.mxu0 0.0
        %631 = vmatprep.subr.mxu0 0.0
        %632 = vmatpush1.msra.mxu0 0.0
        %633 = vmatprep.subr.mxu0 0.0
        %634 = vmatpush1.msra.mxu0 0.0
        %635 = vmatprep.subr.mxu0 0.0
        %636 = vmatpush1.msra.mxu0 0.0
        %637 = vmatprep.subr.mxu0 0.0
        %638 = vmatpush1.msra.mxu0 0.0
        %639 = vmatprep.mubr.f32.mxu0 0.0
        %640 = vmatmul.mubr.f32.gmra.mrb[0].mxu0 %v503
        %v641 = vpop.f32.mrb[0].mxu0
        %v642 = vadd.f32 %v317, %v641
        %v643 = vpop.f32.mrb[0].mxu0
        %644 = vdwg.mxu0
        %v645 = vadd.f32 %v572, %v642
        %v646 = vxor.u32 %v645, 2147483648
        %v647 = vmul.f32 %v646, 1.442695
        %v648 = vpow.pop %v647
        %v649 = vadd.f32 %v648, 1.0
        %v650 = vrcp.pop %v649
        %v651 = vmul.f32 1.0, %v650
        %653 = vrot.lane.b32.xlu0 %v642, 64
        %v654 = vpop.permute.xlu0 %653
        %v656 = vmul.f32 %v651, %v654
        %658 = vrot.lane.b32.xlu0 %v656, 64
        %v659 = vpop.permute.xlu0 %658
        %v661 = vadd.f32 %v572, %v659
        %v662 = vtanh.pop %v661
        %v663 = vsub.f32 1.0, %v651
        %665 = vrot.lane.b32.xlu0 %v662, 96
        %v666 = vpop.permute.xlu0 %665
        %v668 = vmul.f32 %v663, %v666
        %v669 = vmul.f32 %v651, %v499
        %v670 = vadd.f32 %v668, %v669
        %672 = vrot.lane.b32.xlu0 %v670, 96
        %v673 = vpop.permute.xlu0 %672
        %v674 = vsel %vm320, %v673, 0
        %676 = vmatprep.subr.mxu0 0.0
        %677 = vmatpush1.msra.mxu0 %v308
        %678 = vmatprep.subr.mxu0 0.0
        %679 = vmatpush1.msra.mxu0 %v309
        %680 = vmatprep.subr.mxu0 0.0
        %681 = vmatpush1.msra.mxu0 %v310
        %682 = vmatprep.subr.mxu0 0.0
        %683 = vmatpush1.msra.mxu0 %v311
        %684 = vmatprep.subr.mxu0 0.0
        %685 = vmatpush1.msra.mxu0 0.0
        %686 = vmatprep.subr.mxu0 0.0
        %687 = vmatpush1.msra.mxu0 0.0
        %688 = vmatprep.subr.mxu0 0.0
        %689 = vmatpush1.msra.mxu0 0.0
        %690 = vmatprep.subr.mxu0 0.0
        %691 = vmatpush1.msra.mxu0 0.0
        %692 = vmatprep.subr.mxu0 0.0
        %693 = vmatpush1.msra.mxu0 0.0
        %694 = vmatprep.subr.mxu0 0.0
        %695 = vmatpush1.msra.mxu0 0.0
        %696 = vmatprep.subr.mxu0 0.0
        %697 = vmatpush1.msra.mxu0 0.0
        %698 = vmatprep.subr.mxu0 0.0
        %699 = vmatpush1.msra.mxu0 0.0
        %700 = vmatprep.subr.mxu0 0.0
        %701 = vmatpush1.msra.mxu0 0.0
        %702 = vmatprep.subr.mxu0 0.0
        %703 = vmatpush1.msra.mxu0 0.0
        %704 = vmatprep.subr.mxu0 0.0
        %705 = vmatpush1.msra.mxu0 0.0
        %706 = vmatprep.subr.mxu0 0.0
        %707 = vmatpush1.msra.mxu0 0.0
        %708 = vmatprep.subr.mxu0 0.0
        %709 = vmatpush1.msra.mxu0 0.0
        %710 = vmatprep.subr.mxu0 0.0
        %711 = vmatpush1.msra.mxu0 0.0
        %712 = vmatprep.subr.mxu0 0.0
        %713 = vmatpush1.msra.mxu0 0.0
        %714 = vmatprep.subr.mxu0 0.0
        %715 = vmatpush1.msra.mxu0 0.0
        %716 = vmatprep.subr.mxu0 0.0
        %717 = vmatpush1.msra.mxu0 0.0
        %718 = vmatprep.subr.mxu0 0.0
        %719 = vmatpush1.msra.mxu0 0.0
        %720 = vmatprep.subr.mxu0 0.0
        %721 = vmatpush1.msra.mxu0 0.0
        %722 = vmatprep.subr.mxu0 0.0
        %723 = vmatpush1.msra.mxu0 0.0
        %724 = vmatprep.subr.mxu0 0.0
        %725 = vmatpush1.msra.mxu0 0.0
        %726 = vmatprep.subr.mxu0 0.0
        %727 = vmatpush1.msra.mxu0 0.0
        %728 = vmatprep.subr.mxu0 0.0
        %729 = vmatpush1.msra.mxu0 0.0
        %730 = vmatprep.subr.mxu0 0.0
        %731 = vmatpush1.msra.mxu0 0.0
        %732 = vmatprep.subr.mxu0 0.0
        %733 = vmatpush1.msra.mxu0 0.0
        %734 = vmatprep.subr.mxu0 0.0
        %735 = vmatpush1.msra.mxu0 0.0
        %736 = vmatprep.subr.mxu0 0.0
        %737 = vmatpush1.msra.mxu0 0.0
        %738 = vmatprep.subr.mxu0 0.0
        %739 = vmatpush1.msra.mxu0 0.0
        %740 = vmatprep.mubr.f32.mxu0 0.0
        %741 = vmatmul.mubr.f32.gmra.mrb[0].mxu0 %v674
        %v742 = vpop.f32.mrb[0].mxu0
        %v743 = vadd.f32 %v316, %v742
        %v744 = vpop.f32.mrb[0].mxu0
        %745 = vdwg.mxu0
        %746 = vmatprep.subr.mxu0 0.0
        %747 = vmatpush1.msra.mxu0 %v312
        %748 = vmatprep.subr.mxu0 0.0
        %749 = vmatpush1.msra.mxu0 %v313
        %750 = vmatprep.subr.mxu0 0.0
        %751 = vmatpush1.msra.mxu0 %v314
        %752 = vmatprep.subr.mxu0 0.0
        %753 = vmatpush1.msra.mxu0 %v315
        %754 = vmatprep.subr.mxu0 0.0
        %755 = vmatpush1.msra.mxu0 0.0
        %756 = vmatprep.subr.mxu0 0.0
        %757 = vmatpush1.msra.mxu0 0.0
        %758 = vmatprep.subr.mxu0 0.0
        %759 = vmatpush1.msra.mxu0 0.0
        %760 = vmatprep.subr.mxu0 0.0
        %761 = vmatpush1.msra.mxu0 0.0
        %762 = vmatprep.subr.mxu0 0.0
        %763 = vmatpush1.msra.mxu0 0.0
        %764 = vmatprep.subr.mxu0 0.0
        %765 = vmatpush1.msra.mxu0 0.0
        %766 = vmatprep.subr.mxu0 0.0
        %767 = vmatpush1.msra.mxu0 0.0
        %768 = vmatprep.subr.mxu0 0.0
        %769 = vmatpush1.msra.mxu0 0.0
        %770 = vmatprep.subr.mxu0 0.0
        %771 = vmatpush1.msra.mxu0 0.0
        %772 = vmatprep.subr.mxu0 0.0
        %773 = vmatpush1.msra.mxu0 0.0
        %774 = vmatprep.subr.mxu0 0.0
        %775 = vmatpush1.msra.mxu0 0.0
        %776 = vmatprep.subr.mxu0 0.0
        %777 = vmatpush1.msra.mxu0 0.0
        %778 = vmatprep.subr.mxu0 0.0
        %779 = vmatpush1.msra.mxu0 0.0
        %780 = vmatprep.subr.mxu0 0.0
        %781 = vmatpush1.msra.mxu0 0.0
        %782 = vmatprep.subr.mxu0 0.0
        %783 = vmatpush1.msra.mxu0 0.0
        %784 = vmatprep.subr.mxu0 0.0
        %785 = vmatpush1.msra.mxu0 0.0
        %786 = vmatprep.subr.mxu0 0.0
        %787 = vmatpush1.msra.mxu0 0.0
        %788 = vmatprep.subr.mxu0 0.0
        %789 = vmatpush1.msra.mxu0 0.0
        %790 = vmatprep.subr.mxu0 0.0
        %791 = vmatpush1.msra.mxu0 0.0
        %792 = vmatprep.subr.mxu0 0.0
        %793 = vmatpush1.msra.mxu0 0.0
        %794 = vmatprep.subr.mxu0 0.0
        %795 = vmatpush1.msra.mxu0 0.0
        %796 = vmatprep.subr.mxu0 0.0
        %797 = vmatpush1.msra.mxu0 0.0
        %798 = vmatprep.subr.mxu0 0.0
        %799 = vmatpush1.msra.mxu0 0.0
        %800 = vmatprep.subr.mxu0 0.0
        %801 = vmatpush1.msra.mxu0 0.0
        %802 = vmatprep.subr.mxu0 0.0
        %803 = vmatpush1.msra.mxu0 0.0
        %804 = vmatprep.subr.mxu0 0.0
        %805 = vmatpush1.msra.mxu0 0.0
        %806 = vmatprep.subr.mxu0 0.0
        %807 = vmatpush1.msra.mxu0 0.0
        %808 = vmatprep.subr.mxu0 0.0
        %809 = vmatpush1.msra.mxu0 0.0
        %810 = vmatprep.mubr.f32.mxu0 0.0
        %811 = vmatmul.mubr.f32.gmra.mrb[0].mxu0 %v674
        %v812 = vpop.f32.mrb[0].mxu0
        %v813 = vadd.f32 %v317, %v812
        %v814 = vpop.f32.mrb[0].mxu0
        %815 = vdwg.mxu0
        %v816 = vadd.f32 %v743, %v813
        %v817 = vxor.u32 %v816, 2147483648
        %v818 = vmul.f32 %v817, 1.442695
        %v819 = vpow.pop %v818
        %v820 = vadd.f32 %v819, 1.0
        %v821 = vrcp.pop %v820
        %v822 = vmul.f32 1.0, %v821
        %824 = vrot.lane.b32.xlu0 %v813, 64
        %v825 = vpop.permute.xlu0 %824
        %v827 = vmul.f32 %v822, %v825
        %829 = vrot.lane.b32.xlu0 %v827, 64
        %v830 = vpop.permute.xlu0 %829
        %v832 = vadd.f32 %v743, %v830
        %v833 = vtanh.pop %v832
        %v834 = vsub.f32 1.0, %v822
        %836 = vrot.lane.b32.xlu0 %v833, 96
        %v837 = vpop.permute.xlu0 %836
        %v839 = vmul.f32 %v834, %v837
        %v840 = vmul.f32 %v822, %v670
        %v841 = vadd.f32 %v839, %v840
        %843 = vrot.lane.b32.xlu0 %v841, 96
        %v844 = vpop.permute.xlu0 %843
        %vm846 = vcmask 253952
        %847 = vst.msk [vmem:[#allocation2] sm:$0x1] %vm846, %v844
        %848 = vst.msk [vmem:[%s299] sm:$0x1] %vm846, %v844
        %s849 = sand.u32 %s170, 1
        %s850 = scalar_lea.sflag [#allocation7], %s849
        %s851 = sand.u32 %s170, 1
        %s852 = scalar_lea.vmem [#allocation11], %s851
        // Predicated region
        $region61: #{tpu_custom_call.1} parent=43 // pred_check
          %p853 = pneg %p180
        $region62: #{tpu_custom_call.1} parent=43 // pred_check_branch
          %855 = sbr.rel (%p853) target = $region64
        $region63: #{tpu_custom_call.1} parent=43 // pred_region
          %s857 = ssub.s32 16, 16
          %858 = vsyncadd %s850, %s857
          %s859 = smul.addr %s29, 16
          %s860 = scalar_lea.hbm %s7, %s859
          %s862 = sshll.u32 %s852, 4
          %s863 = int_to_ptr.vmem [resolvable:$true] %s862
          %865 = dma.vmem_to_hbm [thread:$0]  %s863, 16, %s860, %s850
        $region64: #{tpu_custom_call.1} parent=43 // pred_fallthru
          _
      $region44: #{tpu_custom_call.1} parent=5 // pred_fallthru
        _
      %p866 = scmp.le.s32.totalorder 2, %s24
      // Predicated region
      $region65: #{tpu_custom_call.1} parent=5 // pred_check
        %p867 = pneg %p866
      $region66: #{tpu_custom_call.1} parent=5 // pred_check_branch
        %869 = sbr.rel (%p867) target = $region68
      $region67: #{tpu_custom_call.1} parent=5 // pred_region
        %s870 = ssub.s32 %s24, 2
        // Predicated region
        $region69: #{tpu_custom_call.1} parent=67 // pred_check
          %p871 = pneg %p186
        $region70: #{tpu_custom_call.1} parent=67 // pred_check_branch
          %873 = sbr.rel (%p871) target = $region72
        $region71: #{tpu_custom_call.1} parent=67 // pred_region
          %s874 = sand.u32 %s171, 1
          %s875 = scalar_lea.sflag [#allocation7], %s874
          %s876 = sand.u32 %s171, 1
          %s877 = scalar_lea.vmem [#allocation11], %s876
          %878 = dma.done %s875, 16
        $region72: #{tpu_custom_call.1} parent=67 // pred_fallthru
          _
      $region68: #{tpu_custom_call.1} parent=5 // pred_fallthru
        _
    $region6: #{tpu_custom_call.1} parent=1 // loop_footer
      %s28 = sadd.s32 1, %s24
    $region7: #{tpu_custom_call.1} parent=1 // loop_footer_branch
      %23 = sbr.rel target = $region3
    $region8: #{tpu_custom_call.1} parent=1 // loop_exit
      _
    %879 = vsyncpa [#allocation6], 1
    %s880 = scalar_lea.sflag [#allocation6], 1
    %881 = vsyncpa %s880, 1
    %882 = vsyncpa [#allocation9], 1
    %883 = vsyncpa [#allocation7], 1
    %s884 = scalar_lea.sflag [#allocation7], 1
    %885 = vsyncpa %s884, 1

</llo_original>
